<compile_context>
chip_gen: v5e
topology: v5e:2x2
jax: 0.10.0
libtpu: 0.0.40
codegen_flags: <defaults>
</compile_context>

<pallas_src>
import functools

import jax
import jax.numpy as jnp
from jax.experimental import pallas as pl
from jax.experimental.pallas import tpu as pltpu

NZ = 10
NX = 32
HIDDEN = 256
BN_EPS = 1e-5
NEG_SLOPE = 0.2
MAX_TILE_B = 512      # batch rows per grid step (multiple of 16)
ALIGN_B = 16          # bf16 sublane packing of the stored h3 intermediate


def _leaky_relu(x, slope=NEG_SLOPE):
    return jnp.where(x > 0, x, slope * x)


def _round_up(n, m):
    return (n + m - 1) // m * m


def _choose_tiling(batch):
    """Pick (tile_b, padded_batch): 16-aligned tiles, prefer >= 2 grid steps
    (v7x has 2 TensorCores), cap at MAX_TILE_B rows per step."""
    b_al = _round_up(batch, ALIGN_B)
    if b_al <= MAX_TILE_B:
        tb = b_al if b_al <= ALIGN_B else _round_up((b_al + 1) // 2, ALIGN_B)
    else:
        tb = MAX_TILE_B
    return tb, _round_up(b_al, tb)


# --------------------------------------------------------------------------
# Kernel A: Linear -> LReLU -> Linear -> LReLU -> Linear
#           emits pre-BN hidden h3 (bf16) + per-tile BN partial sums (f32)
# --------------------------------------------------------------------------
def gen_hidden_kernel(x_ref,
                      w1_ref, b1_ref,
                      w2_ref, b2_ref,
                      w3_ref, b3_ref,
                      h_ref, stats_ref, *, n_valid):
    # Linear(nz, 256) + LeakyReLU(0.2).  w1 is tiny (K=10) and kept f32.
    h = jnp.dot(x_ref[...], w1_ref[...],
                preferred_element_type=jnp.float32) + b1_ref[...]
    h = _leaky_relu(h)

    # Linear(256, 256) + LeakyReLU(0.2)   (bf16 operands, f32 accumulation)
    h = jnp.dot(h.astype(jnp.bfloat16), w2_ref[...],
                preferred_element_type=jnp.float32) + b2_ref[...]
    h = _leaky_relu(h)

    # Linear(256, 256)  -> pre-BatchNorm hidden (f32 in-register)
    h = jnp.dot(h.astype(jnp.bfloat16), w3_ref[...],
                preferred_element_type=jnp.float32) + b3_ref[...]

    # Store h3 as bf16 (halves the dominant intermediate HBM traffic).
    h_ref[...] = h.astype(jnp.bfloat16)

    # Per-tile BN partials in f32 over the VALID rows only (padded rows
    # masked out so BatchNorm statistics match nn.BatchNorm1d exactly).
    tb = h.shape[0]
    row = pl.program_id(0) * tb + jax.lax.broadcasted_iota(jnp.int32, (tb, 1), 0)
    hv = jnp.where(row < n_valid, h, 0.0)
    ssum = jnp.sum(hv, axis=0, keepdims=True)        # (1, HIDDEN)
    ssq = jnp.sum(hv * hv, axis=0, keepdims=True)    # (1, HIDDEN)
    # stats block layout: sublane 0 = sum, sublane 1 = sum of squares, rest 0.
    rid = jax.lax.broadcasted_iota(jnp.int32, (8, HIDDEN), 0)
    stats_ref[...] = (jnp.where(rid == 0, ssum, 0.0)
                      + jnp.where(rid == 1, ssq, 0.0))


# --------------------------------------------------------------------------
# Kernel B: folded BatchNorm affine (scale/shift) -> LReLU -> Linear(256, nx)
# --------------------------------------------------------------------------
def gen_output_kernel(h_ref, scale_ref, shift_ref, w4_ref, b4_ref, o_ref):
    # Single bf16->f32 upcast, elementwise math in f32 (v5e VPU has no bf16
    # ALU), single downcast right before the MXU dot.
    h = h_ref[...].astype(jnp.float32)
    h = _leaky_relu(h * scale_ref[...] + shift_ref[...])
    o_ref[...] = jnp.dot(h.astype(jnp.bfloat16), w4_ref[...],
                         preferred_element_type=jnp.float32) + b4_ref[...]


# --------------------------------------------------------------------------
# Wrapper
# --------------------------------------------------------------------------
def generator_forward(x, params):
    """x: (B, NZ) float32.  params: dict produced by init_params."""
    B = x.shape[0]
    TB, Bp = _choose_tiling(B)
    if Bp != B:
        x = jnp.pad(x, ((0, Bp - B), (0, 0)))
    nt = Bp // TB
    grid = (nt,)

    w1, b1 = params["w1"], params["b1"]
    w2, b2 = params["w2"], params["b2"]
    w3, b3 = params["w3"], params["b3"]
    gamma, beta = params["gamma"], params["beta"]
    w4, b4 = params["w4"], params["b4"]

    const = lambda i: (0, 0)     # weights / biases: VMEM-resident across steps
    rows = lambda i: (i, 0)      # batch-tiled blocks

    # ---- pass 1: pre-BN hidden (bf16) + per-tile BN partials (f32) ---------
    flops_a = 2 * Bp * (NZ * HIDDEN + 2 * HIDDEN * HIDDEN)
    bytes_a = (Bp * NZ * 4 + NZ * HIDDEN * 4 + 2 * HIDDEN * HIDDEN * 2
               + 3 * HIDDEN * 4 + Bp * HIDDEN * 2 + nt * 8 * HIDDEN * 4)
    h3, stats = pl.pallas_call(
        functools.partial(gen_hidden_kernel, n_valid=B),
        out_shape=(jax.ShapeDtypeStruct((Bp, HIDDEN), jnp.bfloat16),
                   jax.ShapeDtypeStruct((nt * 8, HIDDEN), jnp.float32)),
        grid=grid,
        in_specs=[
            pl.BlockSpec((TB, NZ), rows),
            pl.BlockSpec((NZ, HIDDEN), const),
            pl.BlockSpec((1, HIDDEN), const),
            pl.BlockSpec((HIDDEN, HIDDEN), const),
            pl.BlockSpec((1, HIDDEN), const),
            pl.BlockSpec((HIDDEN, HIDDEN), const),
            pl.BlockSpec((1, HIDDEN), const),
        ],
        out_specs=(pl.BlockSpec((TB, HIDDEN), rows),
                   pl.BlockSpec((8, HIDDEN), rows)),
        compiler_params=pltpu.CompilerParams(
            dimension_semantics=("parallel",)),
        cost_estimate=pl.CostEstimate(
            flops=flops_a, transcendentals=0, bytes_accessed=bytes_a),
    )(x, w1, b1, w2, b2, w3, b3)

    # ---- BatchNorm1d statistics (training mode) from the tiny f32 partials --
    st = stats.reshape(nt, 8, HIDDEN)
    ssum = jnp.sum(st[:, 0, :], axis=0, keepdims=True)   # (1, HIDDEN)
    ssq = jnp.sum(st[:, 1, :], axis=0, keepdims=True)    # (1, HIDDEN)
    inv_b = jnp.float32(1.0 / B)
    mean = ssum * inv_b
    var = jnp.maximum(ssq * inv_b - mean * mean, 0.0)    # biased variance
    scale = gamma * jax.lax.rsqrt(var + BN_EPS)
    shift = beta - mean * scale

    # ---- pass 2: BN affine + LeakyReLU + final Linear(256, nx) --------------
    flops_b = 2 * Bp * HIDDEN * NX
    bytes_b = (Bp * HIDDEN * 2 + 2 * HIDDEN * 4 + HIDDEN * NX * 2
               + NX * 4 + Bp * NX * 4)
    out = pl.pallas_call(
        gen_output_kernel,
        out_shape=jax.ShapeDtypeStruct((Bp, NX), jnp.float32),
        grid=grid,
        in_specs=[
            pl.BlockSpec((TB, HIDDEN), rows),
            pl.BlockSpec((1, HIDDEN), const),
            pl.BlockSpec((1, HIDDEN), const),
            pl.BlockSpec((HIDDEN, NX), const),
            pl.BlockSpec((1, NX), const),
        ],
        out_specs=pl.BlockSpec((TB, NX), rows),
        compiler_params=pltpu.CompilerParams(
            dimension_semantics=("parallel",)),
        cost_estimate=pl.CostEstimate(
            flops=flops_b, transcendentals=0, bytes_accessed=bytes_b),
    )(h3, scale, shift, w4, b4)

    return out if Bp == B else out[:B]


# --------------------------------------------------------------------------
# Parameters (PyTorch default inits; big weights stored in bf16)
# --------------------------------------------------------------------------
def init_params(key):
    keys = jax.random.split(key, 8)

    def linear(kw, kb, fan_in, fan_out, w_dtype):
        bound = 1.0 / float(fan_in) ** 0.5
        w = jax.random.uniform(kw, (fan_in, fan_out), jnp.float32, -bound, bound)
        b = jax.random.uniform(kb, (1, fan_out), jnp.float32, -bound, bound)
        return w.astype(w_dtype), b

    w1, b1 = linear(keys[0], keys[1], NZ, HIDDEN, jnp.float32)    # tiny -> f32
    w2, b2 = linear(keys[2], keys[3], HIDDEN, HIDDEN, jnp.bfloat16)
    w3, b3 = linear(keys[4], keys[5], HIDDEN, HIDDEN, jnp.bfloat16)
    w4, b4 = linear(keys[6], keys[7], HIDDEN, NX, jnp.bfloat16)
    gamma = jnp.ones((1, HIDDEN), jnp.float32)   # BatchNorm1d weight init
    beta = jnp.zeros((1, HIDDEN), jnp.float32)   # BatchNorm1d bias init
    return dict(w1=w1, b1=b1, w2=w2, b2=b2, w3=w3, b3=b3,
                gamma=gamma, beta=beta, w4=w4, b4=b4)


# --------------------------------------------------------------------------
# Pure-JAX reference mirroring the kernel numerics (bf16 weights, bf16 h3
# storage, f32 accumulation, f32 batch statistics from the pre-cast h3).
# --------------------------------------------------------------------------
def _reference_forward(x, p):
    def lin_bf16(h, w, b):
        return jnp.dot(h.astype(jnp.bfloat16), w,
                       preferred_element_type=jnp.float32) + b

    h = _leaky_relu(jnp.dot(x, p["w1"],
                            preferred_element_type=jnp.float32) + p["b1"])
    h = _leaky_relu(lin_bf16(h, p["w2"], p["b2"]))
    h3 = lin_bf16(h, p["w3"], p["b3"])
    mean = jnp.mean(h3, axis=0, keepdims=True)
    var = jnp.mean(h3 * h3, axis=0, keepdims=True) - mean * mean   # biased
    scale = p["gamma"] * jax.lax.rsqrt(var + BN_EPS)
    shift = p["beta"] - mean * scale
    h3b = h3.astype(jnp.bfloat16).astype(jnp.float32)   # kernel stores h3 bf16
    h = _leaky_relu(h3b * scale + shift)
    return lin_bf16(h, p["w4"], p["b4"])


if __name__ == "__main__":
    key = jax.random.PRNGKey(0)
    k_param, k_x1, k_x2 = jax.random.split(key, 3)
    params = init_params(k_param)

    fwd = jax.jit(generator_forward)

    # B=8: single grid step, batch padded 8->16 (exercises masked BN stats).
    # B=200: two grid steps, padded 200->224 (tiling + padding + masking).
    for B, kx in ((8, k_x1), (200, k_x2)):
        x = jax.random.normal(kx, (B, NZ), jnp.float32)
        out = jax.block_until_ready(fwd(x, params))
        ref = _reference_forward(x, params)
        assert out.shape == (B, NX)
        err = float(jnp.max(jnp.abs(out - ref)))
        assert jnp.allclose(out, ref, atol=2e-3, rtol=2e-3), \
            f"mismatch vs JAX reference at B={B}: max abs err {err}"

    print("KERNEL_OK")
</pallas_src>

<mosaic_0001>
module attributes {stable_mosaic.version = 11 : i64} {
  func.func @gen_hidden_kernel(%arg0: i32, %arg1: memref<16x10xf32, #tpu.memory_space<vmem>>, %arg2: memref<10x256xf32, #tpu.memory_space<vmem>>, %arg3: memref<1x256xf32, #tpu.memory_space<vmem>>, %arg4: memref<256x256xbf16, #tpu.memory_space<vmem>>, %arg5: memref<1x256xf32, #tpu.memory_space<vmem>>, %arg6: memref<256x256xbf16, #tpu.memory_space<vmem>>, %arg7: memref<1x256xf32, #tpu.memory_space<vmem>>, %arg8: memref<16x256xbf16, #tpu.memory_space<vmem>>, %arg9: memref<8x256xf32, #tpu.memory_space<vmem>>) attributes {dimension_semantics = [#tpu.dimension_semantics<parallel>], iteration_bounds = array<i64: 1>, scalar_prefetch = 0 : i64, scratch_operands = 0 : i64, tpu.core_type = #tpu.core_type<tc>, window_params = [{transform_indices = @transform_0, window_bounds = array<i64: 16, 10>}, {pipeline_mode = #tpu.pipeline_mode<synchronous>, transform_indices = @transform_1, window_bounds = array<i64: 10, 256>}, {pipeline_mode = #tpu.pipeline_mode<synchronous>, transform_indices = @transform_2, window_bounds = array<i64: 1, 256>}, {pipeline_mode = #tpu.pipeline_mode<synchronous>, transform_indices = @transform_3, window_bounds = array<i64: 256, 256>}, {pipeline_mode = #tpu.pipeline_mode<synchronous>, transform_indices = @transform_4, window_bounds = array<i64: 1, 256>}, {pipeline_mode = #tpu.pipeline_mode<synchronous>, transform_indices = @transform_5, window_bounds = array<i64: 256, 256>}, {pipeline_mode = #tpu.pipeline_mode<synchronous>, transform_indices = @transform_6, window_bounds = array<i64: 1, 256>}, {transform_indices = @transform_7, window_bounds = array<i64: 16, 256>}, {transform_indices = @transform_8, window_bounds = array<i64: 8, 256>}]} {
    %c0 = arith.constant 0 : index
    %c0_0 = arith.constant 0 : index
    %0 = vector.load %arg1[%c0, %c0_0] : memref<16x10xf32, #tpu.memory_space<vmem>>, vector<16x10xf32>
    %c0_1 = arith.constant 0 : index
    %c0_2 = arith.constant 0 : index
    %1 = vector.load %arg2[%c0_1, %c0_2] : memref<10x256xf32, #tpu.memory_space<vmem>>, vector<10x256xf32>
    %cst = arith.constant dense<0.000000e+00> : vector<16x256xf32>
    %2 = tpu.matmul %0, %1, %cst {dimension_numbers = #tpu.dot_dimension_numbers<[1], [0], [0], [1], [0, 0, 1, 1], [], []>} : vector<16x10xf32>, vector<10x256xf32>, vector<16x256xf32> -> vector<16x256xf32>
    %c0_3 = arith.constant 0 : index
    %c0_4 = arith.constant 0 : index
    %3 = vector.load %arg3[%c0_3, %c0_4] : memref<1x256xf32, #tpu.memory_space<vmem>>, vector<1x256xf32>
    %4 = vector.broadcast %3 : vector<1x256xf32> to vector<16x256xf32>
    %5 = arith.addf %2, %4 : vector<16x256xf32>
    %cst_5 = arith.constant 0.000000e+00 : f32
    %6 = vector.broadcast %cst_5 : f32 to vector<16x256xf32>
    %7 = arith.cmpf ogt, %5, %6 : vector<16x256xf32>
    %cst_6 = arith.constant 2.000000e-01 : f32
    %8 = vector.broadcast %cst_6 : f32 to vector<16x256xf32>
    %9 = arith.mulf %8, %5 : vector<16x256xf32>
    %10 = arith.select %7, %5, %9 : vector<16x256xi1>, vector<16x256xf32>
    %11 = arith.truncf %10 : vector<16x256xf32> to vector<16x256xbf16>
    %c0_7 = arith.constant 0 : index
    %c0_8 = arith.constant 0 : index
    %12 = vector.load %arg4[%c0_7, %c0_8] : memref<256x256xbf16, #tpu.memory_space<vmem>>, vector<256x256xbf16>
    %cst_9 = arith.constant dense<0.000000e+00> : vector<16x256xf32>
    %13 = tpu.matmul %11, %12, %cst_9 {dimension_numbers = #tpu.dot_dimension_numbers<[1], [0], [0], [1], [0, 0, 1, 1], [], []>} : vector<16x256xbf16>, vector<256x256xbf16>, vector<16x256xf32> -> vector<16x256xf32>
    %c0_10 = arith.constant 0 : index
    %c0_11 = arith.constant 0 : index
    %14 = vector.load %arg5[%c0_10, %c0_11] : memref<1x256xf32, #tpu.memory_space<vmem>>, vector<1x256xf32>
    %15 = vector.broadcast %14 : vector<1x256xf32> to vector<16x256xf32>
    %16 = arith.addf %13, %15 : vector<16x256xf32>
    %cst_12 = arith.constant 0.000000e+00 : f32
    %17 = vector.broadcast %cst_12 : f32 to vector<16x256xf32>
    %18 = arith.cmpf ogt, %16, %17 : vector<16x256xf32>
    %cst_13 = arith.constant 2.000000e-01 : f32
    %19 = vector.broadcast %cst_13 : f32 to vector<16x256xf32>
    %20 = arith.mulf %19, %16 : vector<16x256xf32>
    %21 = arith.select %18, %16, %20 : vector<16x256xi1>, vector<16x256xf32>
    %22 = arith.truncf %21 : vector<16x256xf32> to vector<16x256xbf16>
    %c0_14 = arith.constant 0 : index
    %c0_15 = arith.constant 0 : index
    %23 = vector.load %arg6[%c0_14, %c0_15] : memref<256x256xbf16, #tpu.memory_space<vmem>>, vector<256x256xbf16>
    %cst_16 = arith.constant dense<0.000000e+00> : vector<16x256xf32>
    %24 = tpu.matmul %22, %23, %cst_16 {dimension_numbers = #tpu.dot_dimension_numbers<[1], [0], [0], [1], [0, 0, 1, 1], [], []>} : vector<16x256xbf16>, vector<256x256xbf16>, vector<16x256xf32> -> vector<16x256xf32>
    %c0_17 = arith.constant 0 : index
    %c0_18 = arith.constant 0 : index
    %25 = vector.load %arg7[%c0_17, %c0_18] : memref<1x256xf32, #tpu.memory_space<vmem>>, vector<1x256xf32>
    %26 = vector.broadcast %25 : vector<1x256xf32> to vector<16x256xf32>
    %27 = arith.addf %24, %26 : vector<16x256xf32>
    %28 = arith.truncf %27 : vector<16x256xf32> to vector<16x256xbf16>
    %c0_19 = arith.constant 0 : index
    %c0_20 = arith.constant 0 : index
    %29 = vector.load %arg8[%c0_19, %c0_20] : memref<16x256xbf16, #tpu.memory_space<vmem>>, vector<16x256xbf16>
    tpu.vector_store %arg8[%c0_19, %c0_20], %28 {strides = array<i32>} : memref<16x256xbf16, #tpu.memory_space<vmem>>, vector<16x256xbf16>,
    %c16_i32 = arith.constant 16 : i32
    %30 = arith.muli %arg0, %c16_i32 : i32
    %31 = tpu.iota {dimensions = array<i32: 0>} : vector<16x1xi32>
    %32 = vector.broadcast %30 : i32 to vector<16x1xi32>
    %33 = arith.addi %32, %31 : vector<16x1xi32>
    %c8_i32 = arith.constant 8 : i32
    %34 = vector.broadcast %c8_i32 : i32 to vector<16x1xi32>
    %35 = arith.cmpi slt, %33, %34 : vector<16x1xi32>
    %cst_21 = arith.constant 0.000000e+00 : f32
    %36 = vector.shape_cast %35 : vector<16x1xi1> to vector<16x1xi1>
    %37 = vector.broadcast %36 : vector<16x1xi1> to vector<16x256xi1>
    %38 = vector.broadcast %cst_21 : f32 to vector<16x256xf32>
    %39 = arith.select %37, %27, %38 : vector<16x256xi1>, vector<16x256xf32>
    %cst_22 = arith.constant dense<0.000000e+00> : vector<256xf32>
    %40 = vector.multi_reduction <add>, %39, %cst_22 [0] : vector<16x256xf32> to vector<256xf32>
    %41 = vector.shape_cast %40 : vector<256xf32> to vector<1x256xf32>
    %42 = arith.mulf %39, %39 : vector<16x256xf32>
    %cst_23 = arith.constant dense<0.000000e+00> : vector<256xf32>
    %43 = vector.multi_reduction <add>, %42, %cst_23 [0] : vector<16x256xf32> to vector<256xf32>
    %44 = vector.shape_cast %43 : vector<256xf32> to vector<1x256xf32>
    %45 = tpu.iota {dimensions = array<i32: 0>} : vector<8x256xi32>
    %c0_i32 = arith.constant 0 : i32
    %46 = vector.broadcast %c0_i32 : i32 to vector<8x256xi32>
    %47 = arith.cmpi eq, %45, %46 : vector<8x256xi32>
    %cst_24 = arith.constant 0.000000e+00 : f32
    %48 = vector.shape_cast %41 : vector<1x256xf32> to vector<1x256xf32>
    %49 = vector.broadcast %48 : vector<1x256xf32> to vector<8x256xf32>
    %50 = vector.broadcast %cst_24 : f32 to vector<8x256xf32>
    %51 = arith.select %47, %49, %50 : vector<8x256xi1>, vector<8x256xf32>
    %c1_i32 = arith.constant 1 : i32
    %52 = vector.broadcast %c1_i32 : i32 to vector<8x256xi32>
    %53 = arith.cmpi eq, %45, %52 : vector<8x256xi32>
    %cst_25 = arith.constant 0.000000e+00 : f32
    %54 = vector.shape_cast %44 : vector<1x256xf32> to vector<1x256xf32>
    %55 = vector.broadcast %54 : vector<1x256xf32> to vector<8x256xf32>
    %56 = vector.broadcast %cst_25 : f32 to vector<8x256xf32>
    %57 = arith.select %53, %55, %56 : vector<8x256xi1>, vector<8x256xf32>
    %58 = arith.addf %51, %57 : vector<8x256xf32>
    %c0_26 = arith.constant 0 : index
    %c0_27 = arith.constant 0 : index
    %59 = vector.load %arg9[%c0_26, %c0_27] : memref<8x256xf32, #tpu.memory_space<vmem>>, vector<8x256xf32>
    tpu.vector_store %arg9[%c0_26, %c0_27], %58 {strides = array<i32>} : memref<8x256xf32, #tpu.memory_space<vmem>>, vector<8x256xf32>,
    return
  }
  func.func @transform_0(%arg0: i32) -> (i32, i32) {
    %c0_i32 = arith.constant 0 : i32
    %c0_i32_0 = arith.constant 0 : i32
    return %arg0, %c0_i32 : i32, i32
  }
  func.func @transform_1(%arg0: i32) -> (i32, i32) {
    %c0_i32 = arith.constant 0 : i32
    %c0_i32_0 = arith.constant 0 : i32
    %c0_i32_1 = arith.constant 0 : i32
    return %c0_i32, %c0_i32_0 : i32, i32
  }
  func.func @transform_2(%arg0: i32) -> (i32, i32) {
    %c0_i32 = arith.constant 0 : i32
    %c0_i32_0 = arith.constant 0 : i32
    %c0_i32_1 = arith.constant 0 : i32
    return %c0_i32, %c0_i32_0 : i32, i32
  }
  func.func @transform_3(%arg0: i32) -> (i32, i32) {
    %c0_i32 = arith.constant 0 : i32
    %c0_i32_0 = arith.constant 0 : i32
    %c0_i32_1 = arith.constant 0 : i32
    return %c0_i32, %c0_i32_0 : i32, i32
  }
  func.func @transform_4(%arg0: i32) -> (i32, i32) {
    %c0_i32 = arith.constant 0 : i32
    %c0_i32_0 = arith.constant 0 : i32
    %c0_i32_1 = arith.constant 0 : i32
    return %c0_i32, %c0_i32_0 : i32, i32
  }
  func.func @transform_5(%arg0: i32) -> (i32, i32) {
    %c0_i32 = arith.constant 0 : i32
    %c0_i32_0 = arith.constant 0 : i32
    %c0_i32_1 = arith.constant 0 : i32
    return %c0_i32, %c0_i32_0 : i32, i32
  }
  func.func @transform_6(%arg0: i32) -> (i32, i32) {
    %c0_i32 = arith.constant 0 : i32
    %c0_i32_0 = arith.constant 0 : i32
    %c0_i32_1 = arith.constant 0 : i32
    return %c0_i32, %c0_i32_0 : i32, i32
  }
  func.func @transform_7(%arg0: i32) -> (i32, i32) {
    %c0_i32 = arith.constant 0 : i32
    %c0_i32_0 = arith.constant 0 : i32
    return %arg0, %c0_i32 : i32, i32
  }
  func.func @transform_8(%arg0: i32) -> (i32, i32) {
    %c0_i32 = arith.constant 0 : i32
    %c0_i32_0 = arith.constant 0 : i32
    return %arg0, %c0_i32 : i32, i32
  }
}

module attributes {stable_mosaic.version = 11 : i64} {
  func.func @gen_output_kernel(%arg0: i32, %arg1: memref<16x256xbf16, #tpu.memory_space<vmem>>, %arg2: memref<1x256xf32, #tpu.memory_space<vmem>>, %arg3: memref<1x256xf32, #tpu.memory_space<vmem>>, %arg4: memref<256x32xbf16, #tpu.memory_space<vmem>>, %arg5: memref<1x32xf32, #tpu.memory_space<vmem>>, %arg6: memref<16x32xf32, #tpu.memory_space<vmem>>) attributes {dimension_semantics = [#tpu.dimension_semantics<parallel>], iteration_bounds = array<i64: 1>, scalar_prefetch = 0 : i64, scratch_operands = 0 : i64, tpu.core_type = #tpu.core_type<tc>, window_params = [{transform_indices = @transform_0, window_bounds = array<i64: 16, 256>}, {pipeline_mode = #tpu.pipeline_mode<synchronous>, transform_indices = @transform_1, window_bounds = array<i64: 1, 256>}, {pipeline_mode = #tpu.pipeline_mode<synchronous>, transform_indices = @transform_2, window_bounds = array<i64: 1, 256>}, {pipeline_mode = #tpu.pipeline_mode<synchronous>, transform_indices = @transform_3, window_bounds = array<i64: 256, 32>}, {pipeline_mode = #tpu.pipeline_mode<synchronous>, transform_indices = @transform_4, window_bounds = array<i64: 1, 32>}, {transform_indices = @transform_5, window_bounds = array<i64: 16, 32>}]} {
    %c0 = arith.constant 0 : index
    %c0_0 = arith.constant 0 : index
    %0 = vector.load %arg1[%c0, %c0_0] : memref<16x256xbf16, #tpu.memory_space<vmem>>, vector<16x256xbf16>
    %1 = arith.extf %0 : vector<16x256xbf16> to vector<16x256xf32>
    %c0_1 = arith.constant 0 : index
    %c0_2 = arith.constant 0 : index
    %2 = vector.load %arg2[%c0_1, %c0_2] : memref<1x256xf32, #tpu.memory_space<vmem>>, vector<1x256xf32>
    %3 = vector.broadcast %2 : vector<1x256xf32> to vector<16x256xf32>
    %4 = arith.mulf %1, %3 : vector<16x256xf32>
    %c0_3 = arith.constant 0 : index
    %c0_4 = arith.constant 0 : index
    %5 = vector.load %arg3[%c0_3, %c0_4] : memref<1x256xf32, #tpu.memory_space<vmem>>, vector<1x256xf32>
    %6 = vector.broadcast %5 : vector<1x256xf32> to vector<16x256xf32>
    %7 = arith.addf %4, %6 : vector<16x256xf32>
    %cst = arith.constant 0.000000e+00 : f32
    %8 = vector.broadcast %cst : f32 to vector<16x256xf32>
    %9 = arith.cmpf ogt, %7, %8 : vector<16x256xf32>
    %cst_5 = arith.constant 2.000000e-01 : f32
    %10 = vector.broadcast %cst_5 : f32 to vector<16x256xf32>
    %11 = arith.mulf %10, %7 : vector<16x256xf32>
    %12 = arith.select %9, %7, %11 : vector<16x256xi1>, vector<16x256xf32>
    %13 = arith.truncf %12 : vector<16x256xf32> to vector<16x256xbf16>
    %c0_6 = arith.constant 0 : index
    %c0_7 = arith.constant 0 : index
    %14 = vector.load %arg4[%c0_6, %c0_7] : memref<256x32xbf16, #tpu.memory_space<vmem>>, vector<256x32xbf16>
    %cst_8 = arith.constant dense<0.000000e+00> : vector<16x32xf32>
    %15 = tpu.matmul %13, %14, %cst_8 {dimension_numbers = #tpu.dot_dimension_numbers<[1], [0], [0], [1], [0, 0, 1, 1], [], []>} : vector<16x256xbf16>, vector<256x32xbf16>, vector<16x32xf32> -> vector<16x32xf32>
    %c0_9 = arith.constant 0 : index
    %c0_10 = arith.constant 0 : index
    %16 = vector.load %arg5[%c0_9, %c0_10] : memref<1x32xf32, #tpu.memory_space<vmem>>, vector<1x32xf32>
    %17 = vector.broadcast %16 : vector<1x32xf32> to vector<16x32xf32>
    %18 = arith.addf %15, %17 : vector<16x32xf32>
    %c0_11 = arith.constant 0 : index
    %c0_12 = arith.constant 0 : index
    %19 = vector.load %arg6[%c0_11, %c0_12] : memref<16x32xf32, #tpu.memory_space<vmem>>, vector<16x32xf32>
    tpu.vector_store %arg6[%c0_11, %c0_12], %18 {strides = array<i32>} : memref<16x32xf32, #tpu.memory_space<vmem>>, vector<16x32xf32>,
    return
  }
  func.func @transform_0(%arg0: i32) -> (i32, i32) {
    %c0_i32 = arith.constant 0 : i32
    %c0_i32_0 = arith.constant 0 : i32
    return %arg0, %c0_i32 : i32, i32
  }
  func.func @transform_1(%arg0: i32) -> (i32, i32) {
    %c0_i32 = arith.constant 0 : i32
    %c0_i32_0 = arith.constant 0 : i32
    %c0_i32_1 = arith.constant 0 : i32
    return %c0_i32, %c0_i32_0 : i32, i32
  }
  func.func @transform_2(%arg0: i32) -> (i32, i32) {
    %c0_i32 = arith.constant 0 : i32
    %c0_i32_0 = arith.constant 0 : i32
    %c0_i32_1 = arith.constant 0 : i32
    return %c0_i32, %c0_i32_0 : i32, i32
  }
  func.func @transform_3(%arg0: i32) -> (i32, i32) {
    %c0_i32 = arith.constant 0 : i32
    %c0_i32_0 = arith.constant 0 : i32
    %c0_i32_1 = arith.constant 0 : i32
    return %c0_i32, %c0_i32_0 : i32, i32
  }
  func.func @transform_4(%arg0: i32) -> (i32, i32) {
    %c0_i32 = arith.constant 0 : i32
    %c0_i32_0 = arith.constant 0 : i32
    %c0_i32_1 = arith.constant 0 : i32
    return %c0_i32, %c0_i32_0 : i32, i32
  }
  func.func @transform_5(%arg0: i32) -> (i32, i32) {
    %c0_i32 = arith.constant 0 : i32
    %c0_i32_0 = arith.constant 0 : i32
    return %arg0, %c0_i32 : i32, i32
  }
}

</mosaic_0001>

<llo_original>
// kernel: generator_forward.2
$region0: #{generator_forward.2}
  #allocation0 [shape = 'u32[]', space=smem, size = 0x4, offset = 0x4, fixed_abs, tag = 'smem constant byte address 0x4 - core index']
  #allocation1 [shape = 'u32[72,128]{1,0:T(1,128)}', space=vmem, size = 0x9000, scoped, tag = 'internal scratch']
  %s0 = inlined_call_operand.vmem [shape: f32[16,10], index: 0, kind: input, shape index: {}]
  %s1 = inlined_call_operand.hbm [shape: f32[10,256], index: 1, kind: input, shape index: {}]
  %s2 = inlined_call_operand.vmem [shape: f32[1,256], index: 2, kind: input, shape index: {}]
  %s3 = inlined_call_operand.hbm [shape: bf16[256,256], index: 3, kind: input, shape index: {}]
  %s4 = inlined_call_operand.vmem [shape: f32[1,256], index: 4, kind: input, shape index: {}]
  %s5 = inlined_call_operand.hbm [shape: bf16[256,256], index: 5, kind: input, shape index: {}]
  %s6 = inlined_call_operand.vmem [shape: f32[1,256], index: 6, kind: input, shape index: {}]
  %s7 = inlined_call_operand.vmem [shape: bf16[16,256], index: 7, kind: output, shape index: {0}]
  %s8 = inlined_call_operand.vmem [shape: f32[8,256], index: 8, kind: output, shape index: {1}]
  %9 = xla_tuple %s7, %s8
  %s10 = sld [smem:[#allocation0]]
  $region58: #{generator_forward.2} parent=0
    _
  %s12 = ssub.s32 1, %s10
  %s13 = scalar_select 0, %s12, %s10
  $region1: #{generator_forward.2} parent=0
    #allocation2 [shape = 'u8[16384]{0}', space=vmem, size = 0x4000, scoped, tag = 'input window, operand 1, single buffered']
    #allocation3 [shape = 's32[1]{0}', space=sflag, size = 0x4, scoped, tag = 'scoped memory for generator_forward.2']
    #allocation4 [shape = 'u8[131072]{0}', space=vmem, size = 0x20000, scoped, tag = 'input window, operand 3, single buffered']
    #allocation5 [shape = 's32[1]{0}', space=sflag, size = 0x4, scoped, tag = 'scoped memory for generator_forward.2']
    #allocation6 [shape = 'u8[131072]{0}', space=vmem, size = 0x20000, scoped, tag = 'input window, operand 5, single buffered']
    %14 = vsyncpa [#allocation3], 0
    %15 = vsyncpa [#allocation5], 0
    // Predicated region
    $region2: #{generator_forward.2} parent=1 // pred_check
      _
    $region3: #{generator_forward.2} parent=1 // pred_check_branch
      %17 = sbr.rel (0) target = $region5
    $region4: #{generator_forward.2} parent=1 // pred_region
      _
    $region5: #{generator_forward.2} parent=1 // pred_fallthru
      _
    // Predicated region
    $region6: #{generator_forward.2} parent=1 // pred_check
      _
    $region7: #{generator_forward.2} parent=1 // pred_check_branch
      %19 = sbr.rel (0) target = $region9
    $region8: #{generator_forward.2} parent=1 // pred_region
      %21 = vsyncadd [#allocation3], 0
      %s22 = sshll.u32 %s1, 4
      %s23 = int_to_ptr.hbm [resolvable:$true] %s22
      %s24 = sshll.u32 [#allocation2], 4
      %s25 = int_to_ptr.vmem [resolvable:$true] %s24
      %30 = dma.hbm_to_vmem [thread:$0]  %s23, 512, %s25, [#allocation3], 256, 256, 16
    $region9: #{generator_forward.2} parent=1 // pred_fallthru
      _
    // Predicated region
    $region10: #{generator_forward.2} parent=1 // pred_check
      _
    $region11: #{generator_forward.2} parent=1 // pred_check_branch
      %32 = sbr.rel (0) target = $region13
    $region12: #{generator_forward.2} parent=1 // pred_region
      _
    $region13: #{generator_forward.2} parent=1 // pred_fallthru
      _
    // Predicated region
    $region14: #{generator_forward.2} parent=1 // pred_check
      _
    $region15: #{generator_forward.2} parent=1 // pred_check_branch
      %34 = sbr.rel (0) target = $region17
    $region16: #{generator_forward.2} parent=1 // pred_region
      %36 = vsyncadd [#allocation5], 0
      %s37 = sshll.u32 %s3, 4
      %s38 = int_to_ptr.hbm [resolvable:$true] %s37
      %s39 = sshll.u32 [#allocation4], 4
      %s40 = int_to_ptr.vmem [resolvable:$true] %s39
      %45 = dma.hbm_to_vmem [thread:$0]  %s38, 4096, %s40, [#allocation5], 128, 128, 8
    $region17: #{generator_forward.2} parent=1 // pred_fallthru
      _
    // Predicated region
    $region18: #{generator_forward.2} parent=1 // pred_check
      _
    $region19: #{generator_forward.2} parent=1 // pred_check_branch
      %47 = sbr.rel (0) target = $region21
    $region20: #{generator_forward.2} parent=1 // pred_region
      _
    $region21: #{generator_forward.2} parent=1 // pred_fallthru
      _
    // Predicated region
    $region22: #{generator_forward.2} parent=1 // pred_check
      _
    $region23: #{generator_forward.2} parent=1 // pred_check_branch
      %49 = sbr.rel (0) target = $region25
    $region24: #{generator_forward.2} parent=1 // pred_region
      %51 = vsyncadd [#allocation5], 0
      %s52 = sshll.u32 %s5, 4
      %s53 = int_to_ptr.hbm [resolvable:$true] %s52
      %s54 = sshll.u32 [#allocation6], 4
      %s55 = int_to_ptr.vmem [resolvable:$true] %s54
      %60 = dma.hbm_to_vmem [thread:$0]  %s53, 4096, %s55, [#allocation5], 128, 128, 8
    $region25: #{generator_forward.2} parent=1 // pred_fallthru
      _
    // Predicated region
    $region26: #{generator_forward.2} parent=1 // pred_check
      _
    $region27: #{generator_forward.2} parent=1 // pred_check_branch
      %62 = sbr.rel (0) target = $region29
    $region28: #{generator_forward.2} parent=1 // pred_region
      _
    $region29: #{generator_forward.2} parent=1 // pred_fallthru
      _
    // Predicated region
    $region30: #{generator_forward.2} parent=1 // pred_check
      _
    $region31: #{generator_forward.2} parent=1 // pred_check_branch
      %64 = sbr.rel (0) target = $region33
    $region32: #{generator_forward.2} parent=1 // pred_region
      %66 = dma.done [#allocation3], 512
    $region33: #{generator_forward.2} parent=1 // pred_fallthru
      _
    // Predicated region
    $region34: #{generator_forward.2} parent=1 // pred_check
      _
    $region35: #{generator_forward.2} parent=1 // pred_check_branch
      %68 = sbr.rel (0) target = $region37
    $region36: #{generator_forward.2} parent=1 // pred_region
      %70 = dma.done [#allocation5], 4096
    $region37: #{generator_forward.2} parent=1 // pred_fallthru
      _
    // Predicated region
    $region38: #{generator_forward.2} parent=1 // pred_check
      _
    $region39: #{generator_forward.2} parent=1 // pred_check_branch
      %72 = sbr.rel (0) target = $region41
    $region40: #{generator_forward.2} parent=1 // pred_region
      %74 = dma.done [#allocation5], 4096
    $region41: #{generator_forward.2} parent=1 // pred_fallthru
      _
    %v75 = vld [vmem:[%s0] sm:$0xff]
    %v76 = vld [vmem:[%s0 + $0x8] sm:$0xff]
    %v77 = vld [vmem:[#allocation2] sm:$0xff]
    %v78 = vld [vmem:[#allocation2 + $0x8] sm:$0xff]
    %v79 = vld [vmem:[#allocation2 + $0x10] sm:$0x3]
    %v80 = vld [vmem:[#allocation2 + $0x18] sm:$0x3]
    %v81 = vld [vmem:[%s2] sm:$0x3]
    %v83 = vperm.slane %v81, 0
    %v84 = vperm.slane %v81, 1
    %vm87 = vcmask 80896
    %v89 = vsel %vm87, %v75, 0
    %v92 = vsel %vm87, %v76, 0
    %vm94 = vcmask 1041408
    %v96 = vsel %vm94, %v79, 0
    %v99 = vsel %vm94, %v80, 0
    %101 = vmatpush.msra.mxu0 0.0
    %102 = vmatpush.msra.mxu0 0.0
    %103 = vmatpush.msra.mxu0 0.0
    %104 = vmatpush.msra.mxu0 0.0
    %105 = vmatpush.msra.mxu0 0.0
    %106 = vmatpush.msra.mxu0 0.0
    %107 = vmatpush.msra.mxu0 0.0
    %108 = vmatpush.msra.mxu0 0.0
    %109 = vmatpush.msra.mxu0 0.0
    %110 = vmatpush.msra.mxu0 0.0
    %111 = vmatpush.msra.mxu0 0.0
    %112 = vmatpush.msra.mxu0 0.0
    %113 = vmatpush.msra.mxu0 0.0
    %114 = vmatpush.msra.mxu0 0.0
    %115 = vmatpush.msra.mxu0 %v96
    %116 = vmatpush.msra.mxu0 %v77
    %117 = vmatmul.f32.gmra.mxu0 %v89
    %v118 = vpop.f32.mrf.mxu0
    %v119 = vadd.f32 %v83, %v118
    %120 = vmatmul.f32.gmra.mxu0 %v92
    %v121 = vpop.f32.mrf.mxu0
    %v122 = vadd.f32 %v83, %v121
    %123 = vdwg.mxu0
    %124 = vmatpush.msra.mxu0 0.0
    %125 = vmatpush.msra.mxu0 0.0
    %126 = vmatpush.msra.mxu0 0.0
    %127 = vmatpush.msra.mxu0 0.0
    %128 = vmatpush.msra.mxu0 0.0
    %129 = vmatpush.msra.mxu0 0.0
    %130 = vmatpush.msra.mxu0 0.0
    %131 = vmatpush.msra.mxu0 0.0
    %132 = vmatpush.msra.mxu0 0.0
    %133 = vmatpush.msra.mxu0 0.0
    %134 = vmatpush.msra.mxu0 0.0
    %135 = vmatpush.msra.mxu0 0.0
    %136 = vmatpush.msra.mxu0 0.0
    %137 = vmatpush.msra.mxu0 0.0
    %138 = vmatpush.msra.mxu0 %v99
    %139 = vmatpush.msra.mxu0 %v78
    %140 = vmatmul.f32.gmra.mxu0 %v89
    %v141 = vpop.f32.mrf.mxu0
    %v142 = vadd.f32 %v84, %v141
    %143 = vmatmul.f32.gmra.mxu0 %v92
    %v144 = vpop.f32.mrf.mxu0
    %v145 = vadd.f32 %v84, %v144
    %146 = vdwg.mxu0
    %vm147 = vcmp.gt.f32.partialorder %v119, 0.0
    %vm148 = vcmp.gt.f32.partialorder %v142, 0.0
    %vm149 = vcmp.gt.f32.partialorder %v122, 0.0
    %vm150 = vcmp.gt.f32.partialorder %v145, 0.0
    %v151 = vmul.f32 %v119, 0.2
    %v152 = vmul.f32 %v142, 0.2
    %v153 = vmul.f32 %v122, 0.2
    %v154 = vmul.f32 %v145, 0.2
    %v155 = vsel %vm147, %v119, %v151
    %v156 = vsel %vm148, %v142, %v152
    %v157 = vsel %vm149, %v122, %v153
    %v158 = vsel %vm150, %v145, %v154
    %v159 = vpack.c.bf16 %v157, %v155
    %v160 = vpack.c.bf16 %v158, %v156
    %v161 = vld [vmem:[#allocation4] sm:$0xff]
    %v162 = vld [vmem:[#allocation4 + $0x8] sm:$0xff]
    %v163 = vld [vmem:[#allocation4 + $0x10] sm:$0xff]
    %v164 = vld [vmem:[#allocation4 + $0x18] sm:$0xff]
    %v165 = vld [vmem:[#allocation4 + $0x20] sm:$0xff]
    %v166 = vld [vmem:[#allocation4 + $0x28] sm:$0xff]
    %v167 = vld [vmem:[#allocation4 + $0x30] sm:$0xff]
    %v168 = vld [vmem:[#allocation4 + $0x38] sm:$0xff]
    %v169 = vld [vmem:[#allocation4 + $0x40] sm:$0xff]
    %v170 = vld [vmem:[#allocation4 + $0x48] sm:$0xff]
    %v171 = vld [vmem:[#allocation4 + $0x50] sm:$0xff]
    %v172 = vld [vmem:[#allocation4 + $0x58] sm:$0xff]
    %v173 = vld [vmem:[#allocation4 + $0x60] sm:$0xff]
    %v174 = vld [vmem:[#allocation4 + $0x68] sm:$0xff]
    %v175 = vld [vmem:[#allocation4 + $0x70] sm:$0xff]
    %v176 = vld [vmem:[#allocation4 + $0x78] sm:$0xff]
    %v177 = vld [vmem:[#allocation4 + $0x80] sm:$0xff]
    %v178 = vld [vmem:[#allocation4 + $0x88] sm:$0xff]
    %v179 = vld [vmem:[#allocation4 + $0x90] sm:$0xff]
    %v180 = vld [vmem:[#allocation4 + $0x98] sm:$0xff]
    %v181 = vld [vmem:[#allocation4 + $0xa0] sm:$0xff]
    %v182 = vld [vmem:[#allocation4 + $0xa8] sm:$0xff]
    %v183 = vld [vmem:[#allocation4 + $0xb0] sm:$0xff]
    %v184 = vld [vmem:[#allocation4 + $0xb8] sm:$0xff]
    %v185 = vld [vmem:[#allocation4 + $0xc0] sm:$0xff]
    %v186 = vld [vmem:[#allocation4 + $0xc8] sm:$0xff]
    %v187 = vld [vmem:[#allocation4 + $0xd0] sm:$0xff]
    %v188 = vld [vmem:[#allocation4 + $0xd8] sm:$0xff]
    %v189 = vld [vmem:[#allocation4 + $0xe0] sm:$0xff]
    %v190 = vld [vmem:[#allocation4 + $0xe8] sm:$0xff]
    %v191 = vld [vmem:[#allocation4 + $0xf0] sm:$0xff]
    %v192 = vld [vmem:[#allocation4 + $0xf8] sm:$0xff]
    %v193 = vld [vmem:[%s4] sm:$0x3]
    %v195 = vperm.slane %v193, 0
    %v196 = vperm.slane %v193, 1
    %v231 = vunpack.c.l.b16 %v161
    %v232 = vunpack.c.h.b16 %v161
    %v233 = vunpack.c.l.b16 %v162
    %v234 = vunpack.c.h.b16 %v162
    %v235 = vunpack.c.l.b16 %v163
    %v236 = vunpack.c.h.b16 %v163
    %v237 = vunpack.c.l.b16 %v164
    %v238 = vunpack.c.h.b16 %v164
    %v239 = vunpack.c.l.b16 %v165
    %v240 = vunpack.c.h.b16 %v165
    %v241 = vunpack.c.l.b16 %v166
    %v242 = vunpack.c.h.b16 %v166
    %v243 = vunpack.c.l.b16 %v167
    %v244 = vunpack.c.h.b16 %v167
    %v245 = vunpack.c.l.b16 %v168
    %v246 = vunpack.c.h.b16 %v168
    %v247 = vunpack.c.l.b16 %v169
    %v248 = vunpack.c.h.b16 %v169
    %v249 = vunpack.c.l.b16 %v170
    %v250 = vunpack.c.h.b16 %v170
    %v251 = vunpack.c.l.b16 %v171
    %v252 = vunpack.c.h.b16 %v171
    %v253 = vunpack.c.l.b16 %v172
    %v254 = vunpack.c.h.b16 %v172
    %v255 = vunpack.c.l.b16 %v173
    %v256 = vunpack.c.h.b16 %v173
    %v257 = vunpack.c.l.b16 %v174
    %v258 = vunpack.c.h.b16 %v174
    %v259 = vunpack.c.l.b16 %v175
    %v260 = vunpack.c.h.b16 %v175
    %v261 = vunpack.c.l.b16 %v176
    %v262 = vunpack.c.h.b16 %v176
    %v263 = vunpack.c.l.b16 %v177
    %v264 = vunpack.c.h.b16 %v177
    %v265 = vunpack.c.l.b16 %v178
    %v266 = vunpack.c.h.b16 %v178
    %v267 = vunpack.c.l.b16 %v179
    %v268 = vunpack.c.h.b16 %v179
    %v269 = vunpack.c.l.b16 %v180
    %v270 = vunpack.c.h.b16 %v180
    %v271 = vunpack.c.l.b16 %v181
    %v272 = vunpack.c.h.b16 %v181
    %v273 = vunpack.c.l.b16 %v182
    %v274 = vunpack.c.h.b16 %v182
    %v275 = vunpack.c.l.b16 %v183
    %v276 = vunpack.c.h.b16 %v183
    %v277 = vunpack.c.l.b16 %v184
    %v278 = vunpack.c.h.b16 %v184
    %v279 = vunpack.c.l.b16 %v185
    %v280 = vunpack.c.h.b16 %v185
    %v281 = vunpack.c.l.b16 %v186
    %v282 = vunpack.c.h.b16 %v186
    %v283 = vunpack.c.l.b16 %v187
    %v284 = vunpack.c.h.b16 %v187
    %v285 = vunpack.c.l.b16 %v188
    %v286 = vunpack.c.h.b16 %v188
    %v287 = vunpack.c.l.b16 %v189
    %v288 = vunpack.c.h.b16 %v189
    %v289 = vunpack.c.l.b16 %v190
    %v290 = vunpack.c.h.b16 %v190
    %v291 = vunpack.c.l.b16 %v191
    %v292 = vunpack.c.h.b16 %v191
    %v293 = vunpack.c.l.b16 %v192
    %v294 = vunpack.c.h.b16 %v192
    %v295 = vpack.c.b16 %v233, %v231
    %v296 = vpack.c.b16 %v234, %v232
    %v297 = vpack.c.b16 %v237, %v235
    %v298 = vpack.c.b16 %v238, %v236
    %v299 = vpack.c.b16 %v241, %v239
    %v300 = vpack.c.b16 %v242, %v240
    %v301 = vpack.c.b16 %v245, %v243
    %v302 = vpack.c.b16 %v246, %v244
    %v303 = vpack.c.b16 %v249, %v247
    %v304 = vpack.c.b16 %v250, %v248
    %v305 = vpack.c.b16 %v253, %v251
    %v306 = vpack.c.b16 %v254, %v252
    %v307 = vpack.c.b16 %v257, %v255
    %v308 = vpack.c.b16 %v258, %v256
    %v309 = vpack.c.b16 %v261, %v259
    %v310 = vpack.c.b16 %v262, %v260
    %v311 = vpack.c.b16 %v265, %v263
    %v312 = vpack.c.b16 %v266, %v264
    %v313 = vpack.c.b16 %v269, %v267
    %v314 = vpack.c.b16 %v270, %v268
    %v315 = vpack.c.b16 %v273, %v271
    %v316 = vpack.c.b16 %v274, %v272
    %v317 = vpack.c.b16 %v277, %v275
    %v318 = vpack.c.b16 %v278, %v276
    %v319 = vpack.c.b16 %v281, %v279
    %v320 = vpack.c.b16 %v282, %v280
    %v321 = vpack.c.b16 %v285, %v283
    %v322 = vpack.c.b16 %v286, %v284
    %v323 = vpack.c.b16 %v289, %v287
    %v324 = vpack.c.b16 %v290, %v288
    %v325 = vpack.c.b16 %v293, %v291
    %v326 = vpack.c.b16 %v294, %v292
    %359 = vmatpush.bf16.msra.mxu0 %v309
    %360 = vmatpush.bf16.msra.mxu0 %v307
    %361 = vmatpush.bf16.msra.mxu0 %v305
    %362 = vmatpush.bf16.msra.mxu0 %v303
    %363 = vmatpush.bf16.msra.mxu0 %v301
    %364 = vmatpush.bf16.msra.mxu0 %v299
    %365 = vmatpush.bf16.msra.mxu0 %v297
    %366 = vmatpush.bf16.msra.mxu0 %v295
    %367 = vmatmul.bf16.gmra.mxu0 %v159
    %v368 = vpop.f32.mrf.mxu0
    %v369 = vadd.f32 %v195, %v368
    %v370 = vpop.f32.mrf.mxu0
    %v371 = vadd.f32 %v195, %v370
    %372 = vdwg.mxu0
    %373 = vmatpush.bf16.msra.mxu0 %v325
    %374 = vmatpush.bf16.msra.mxu0 %v323
    %375 = vmatpush.bf16.msra.mxu0 %v321
    %376 = vmatpush.bf16.msra.mxu0 %v319
    %377 = vmatpush.bf16.msra.mxu0 %v317
    %378 = vmatpush.bf16.msra.mxu0 %v315
    %379 = vmatpush.bf16.msra.mxu0 %v313
    %380 = vmatpush.bf16.msra.mxu0 %v311
    %381 = vmatmul.bf16.gmra.mxu0 %v160
    %v382 = vpop.f32.mrf.mxu0
    %v383 = vadd.f32 %v369, %v382
    %v384 = vpop.f32.mrf.mxu0
    %v385 = vadd.f32 %v371, %v384
    %386 = vdwg.mxu0
    %387 = vmatpush.bf16.msra.mxu0 %v310
    %388 = vmatpush.bf16.msra.mxu0 %v308
    %389 = vmatpush.bf16.msra.mxu0 %v306
    %390 = vmatpush.bf16.msra.mxu0 %v304
    %391 = vmatpush.bf16.msra.mxu0 %v302
    %392 = vmatpush.bf16.msra.mxu0 %v300
    %393 = vmatpush.bf16.msra.mxu0 %v298
    %394 = vmatpush.bf16.msra.mxu0 %v296
    %395 = vmatmul.bf16.gmra.mxu0 %v159
    %v396 = vpop.f32.mrf.mxu0
    %v397 = vadd.f32 %v196, %v396
    %v398 = vpop.f32.mrf.mxu0
    %v399 = vadd.f32 %v196, %v398
    %400 = vdwg.mxu0
    %401 = vmatpush.bf16.msra.mxu0 %v326
    %402 = vmatpush.bf16.msra.mxu0 %v324
    %403 = vmatpush.bf16.msra.mxu0 %v322
    %404 = vmatpush.bf16.msra.mxu0 %v320
    %405 = vmatpush.bf16.msra.mxu0 %v318
    %406 = vmatpush.bf16.msra.mxu0 %v316
    %407 = vmatpush.bf16.msra.mxu0 %v314
    %408 = vmatpush.bf16.msra.mxu0 %v312
    %409 = vmatmul.bf16.gmra.mxu0 %v160
    %v410 = vpop.f32.mrf.mxu0
    %v411 = vadd.f32 %v397, %v410
    %v412 = vpop.f32.mrf.mxu0
    %v413 = vadd.f32 %v399, %v412
    %414 = vdwg.mxu0
    %vm415 = vcmp.gt.f32.partialorder %v383, 0.0
    %vm416 = vcmp.gt.f32.partialorder %v411, 0.0
    %vm417 = vcmp.gt.f32.partialorder %v385, 0.0
    %vm418 = vcmp.gt.f32.partialorder %v413, 0.0
    %v419 = vmul.f32 %v383, 0.2
    %v420 = vmul.f32 %v411, 0.2
    %v421 = vmul.f32 %v385, 0.2
    %v422 = vmul.f32 %v413, 0.2
    %v423 = vsel %vm415, %v383, %v419
    %v424 = vsel %vm416, %v411, %v420
    %v425 = vsel %vm417, %v385, %v421
    %v426 = vsel %vm418, %v413, %v422
    %v427 = vpack.c.bf16 %v425, %v423
    %v428 = vpack.c.bf16 %v426, %v424
    %v429 = vld [vmem:[#allocation6] sm:$0xff]
    %v430 = vld [vmem:[#allocation6 + $0x8] sm:$0xff]
    %v431 = vld [vmem:[#allocation6 + $0x10] sm:$0xff]
    %v432 = vld [vmem:[#allocation6 + $0x18] sm:$0xff]
    %v433 = vld [vmem:[#allocation6 + $0x20] sm:$0xff]
    %v434 = vld [vmem:[#allocation6 + $0x28] sm:$0xff]
    %v435 = vld [vmem:[#allocation6 + $0x30] sm:$0xff]
    %v436 = vld [vmem:[#allocation6 + $0x38] sm:$0xff]
    %v437 = vld [vmem:[#allocation6 + $0x40] sm:$0xff]
    %v438 = vld [vmem:[#allocation6 + $0x48] sm:$0xff]
    %v439 = vld [vmem:[#allocation6 + $0x50] sm:$0xff]
    %v440 = vld [vmem:[#allocation6 + $0x58] sm:$0xff]
    %v441 = vld [vmem:[#allocation6 + $0x60] sm:$0xff]
    %v442 = vld [vmem:[#allocation6 + $0x68] sm:$0xff]
    %v443 = vld [vmem:[#allocation6 + $0x70] sm:$0xff]
    %v444 = vld [vmem:[#allocation6 + $0x78] sm:$0xff]
    %v445 = vld [vmem:[#allocation6 + $0x80] sm:$0xff]
    %v446 = vld [vmem:[#allocation6 + $0x88] sm:$0xff]
    %v447 = vld [vmem:[#allocation6 + $0x90] sm:$0xff]
    %v448 = vld [vmem:[#allocation6 + $0x98] sm:$0xff]
    %v449 = vld [vmem:[#allocation6 + $0xa0] sm:$0xff]
    %v450 = vld [vmem:[#allocation6 + $0xa8] sm:$0xff]
    %v451 = vld [vmem:[#allocation6 + $0xb0] sm:$0xff]
    %v452 = vld [vmem:[#allocation6 + $0xb8] sm:$0xff]
    %v453 = vld [vmem:[#allocation6 + $0xc0] sm:$0xff]
    %v454 = vld [vmem:[#allocation6 + $0xc8] sm:$0xff]
    %v455 = vld [vmem:[#allocation6 + $0xd0] sm:$0xff]
    %v456 = vld [vmem:[#allocation6 + $0xd8] sm:$0xff]
    %v457 = vld [vmem:[#allocation6 + $0xe0] sm:$0xff]
    %v458 = vld [vmem:[#allocation6 + $0xe8] sm:$0xff]
    %v459 = vld [vmem:[#allocation6 + $0xf0] sm:$0xff]
    %v460 = vld [vmem:[#allocation6 + $0xf8] sm:$0xff]
    %v461 = vld [vmem:[%s6] sm:$0x3]
    %v463 = vperm.slane %v461, 0
    %v464 = vperm.slane %v461, 1
    %v499 = vunpack.c.l.b16 %v429
    %v500 = vunpack.c.h.b16 %v429
    %v501 = vunpack.c.l.b16 %v430
    %v502 = vunpack.c.h.b16 %v430
    %v503 = vunpack.c.l.b16 %v431
    %v504 = vunpack.c.h.b16 %v431
    %v505 = vunpack.c.l.b16 %v432
    %v506 = vunpack.c.h.b16 %v432
    %v507 = vunpack.c.l.b16 %v433
    %v508 = vunpack.c.h.b16 %v433
    %v509 = vunpack.c.l.b16 %v434
    %v510 = vunpack.c.h.b16 %v434
    %v511 = vunpack.c.l.b16 %v435
    %v512 = vunpack.c.h.b16 %v435
    %v513 = vunpack.c.l.b16 %v436
    %v514 = vunpack.c.h.b16 %v436
    %v515 = vunpack.c.l.b16 %v437
    %v516 = vunpack.c.h.b16 %v437
    %v517 = vunpack.c.l.b16 %v438
    %v518 = vunpack.c.h.b16 %v438
    %v519 = vunpack.c.l.b16 %v439
    %v520 = vunpack.c.h.b16 %v439
    %v521 = vunpack.c.l.b16 %v440
    %v522 = vunpack.c.h.b16 %v440
    %v523 = vunpack.c.l.b16 %v441
    %v524 = vunpack.c.h.b16 %v441
    %v525 = vunpack.c.l.b16 %v442
    %v526 = vunpack.c.h.b16 %v442
    %v527 = vunpack.c.l.b16 %v443
    %v528 = vunpack.c.h.b16 %v443
    %v529 = vunpack.c.l.b16 %v444
    %v530 = vunpack.c.h.b16 %v444
    %v531 = vunpack.c.l.b16 %v445
    %v532 = vunpack.c.h.b16 %v445
    %v533 = vunpack.c.l.b16 %v446
    %v534 = vunpack.c.h.b16 %v446
    %v535 = vunpack.c.l.b16 %v447
    %v536 = vunpack.c.h.b16 %v447
    %v537 = vunpack.c.l.b16 %v448
    %v538 = vunpack.c.h.b16 %v448
    %v539 = vunpack.c.l.b16 %v449
    %v540 = vunpack.c.h.b16 %v449
    %v541 = vunpack.c.l.b16 %v450
    %v542 = vunpack.c.h.b16 %v450
    %v543 = vunpack.c.l.b16 %v451
    %v544 = vunpack.c.h.b16 %v451
    %v545 = vunpack.c.l.b16 %v452
    %v546 = vunpack.c.h.b16 %v452
    %v547 = vunpack.c.l.b16 %v453
    %v548 = vunpack.c.h.b16 %v453
    %v549 = vunpack.c.l.b16 %v454
    %v550 = vunpack.c.h.b16 %v454
    %v551 = vunpack.c.l.b16 %v455
    %v552 = vunpack.c.h.b16 %v455
    %v553 = vunpack.c.l.b16 %v456
    %v554 = vunpack.c.h.b16 %v456
    %v555 = vunpack.c.l.b16 %v457
    %v556 = vunpack.c.h.b16 %v457
    %v557 = vunpack.c.l.b16 %v458
    %v558 = vunpack.c.h.b16 %v458
    %v559 = vunpack.c.l.b16 %v459
    %v560 = vunpack.c.h.b16 %v459
    %v561 = vunpack.c.l.b16 %v460
    %v562 = vunpack.c.h.b16 %v460
    %v563 = vpack.c.b16 %v501, %v499
    %v564 = vpack.c.b16 %v502, %v500
    %v565 = vpack.c.b16 %v505, %v503
    %v566 = vpack.c.b16 %v506, %v504
    %v567 = vpack.c.b16 %v509, %v507
    %v568 = vpack.c.b16 %v510, %v508
    %v569 = vpack.c.b16 %v513, %v511
    %v570 = vpack.c.b16 %v514, %v512
    %v571 = vpack.c.b16 %v517, %v515
    %v572 = vpack.c.b16 %v518, %v516
    %v573 = vpack.c.b16 %v521, %v519
    %v574 = vpack.c.b16 %v522, %v520
    %v575 = vpack.c.b16 %v525, %v523
    %v576 = vpack.c.b16 %v526, %v524
    %v577 = vpack.c.b16 %v529, %v527
    %v578 = vpack.c.b16 %v530, %v528
    %v579 = vpack.c.b16 %v533, %v531
    %v580 = vpack.c.b16 %v534, %v532
    %v581 = vpack.c.b16 %v537, %v535
    %v582 = vpack.c.b16 %v538, %v536
    %v583 = vpack.c.b16 %v541, %v539
    %v584 = vpack.c.b16 %v542, %v540
    %v585 = vpack.c.b16 %v545, %v543
    %v586 = vpack.c.b16 %v546, %v544
    %v587 = vpack.c.b16 %v549, %v547
    %v588 = vpack.c.b16 %v550, %v548
    %v589 = vpack.c.b16 %v553, %v551
    %v590 = vpack.c.b16 %v554, %v552
    %v591 = vpack.c.b16 %v557, %v555
    %v592 = vpack.c.b16 %v558, %v556
    %v593 = vpack.c.b16 %v561, %v559
    %v594 = vpack.c.b16 %v562, %v560
    %627 = vmatpush.bf16.msra.mxu0 %v577
    %628 = vmatpush.bf16.msra.mxu0 %v575
    %629 = vmatpush.bf16.msra.mxu0 %v573
    %630 = vmatpush.bf16.msra.mxu0 %v571
    %631 = vmatpush.bf16.msra.mxu0 %v569
    %632 = vmatpush.bf16.msra.mxu0 %v567
    %633 = vmatpush.bf16.msra.mxu0 %v565
    %634 = vmatpush.bf16.msra.mxu0 %v563
    %635 = vmatmul.bf16.gmra.mxu0 %v427
    %v636 = vpop.f32.mrf.mxu0
    %v637 = vadd.f32 %v463, %v636
    %v638 = vpop.f32.mrf.mxu0
    %v639 = vadd.f32 %v463, %v638
    %640 = vdwg.mxu0
    %641 = vmatpush.bf16.msra.mxu0 %v593
    %642 = vmatpush.bf16.msra.mxu0 %v591
    %643 = vmatpush.bf16.msra.mxu0 %v589
    %644 = vmatpush.bf16.msra.mxu0 %v587
    %645 = vmatpush.bf16.msra.mxu0 %v585
    %646 = vmatpush.bf16.msra.mxu0 %v583
    %647 = vmatpush.bf16.msra.mxu0 %v581
    %648 = vmatpush.bf16.msra.mxu0 %v579
    %649 = vmatmul.bf16.gmra.mxu0 %v428
    %v650 = vpop.f32.mrf.mxu0
    %v651 = vadd.f32 %v637, %v650
    %v652 = vpop.f32.mrf.mxu0
    %v653 = vadd.f32 %v639, %v652
    %654 = vdwg.mxu0
    %655 = vmatpush.bf16.msra.mxu0 %v578
    %656 = vmatpush.bf16.msra.mxu0 %v576
    %657 = vmatpush.bf16.msra.mxu0 %v574
    %658 = vmatpush.bf16.msra.mxu0 %v572
    %659 = vmatpush.bf16.msra.mxu0 %v570
    %660 = vmatpush.bf16.msra.mxu0 %v568
    %661 = vmatpush.bf16.msra.mxu0 %v566
    %662 = vmatpush.bf16.msra.mxu0 %v564
    %663 = vmatmul.bf16.gmra.mxu0 %v427
    %v664 = vpop.f32.mrf.mxu0
    %v665 = vadd.f32 %v464, %v664
    %v666 = vpop.f32.mrf.mxu0
    %v667 = vadd.f32 %v464, %v666
    %668 = vdwg.mxu0
    %669 = vmatpush.bf16.msra.mxu0 %v594
    %670 = vmatpush.bf16.msra.mxu0 %v592
    %671 = vmatpush.bf16.msra.mxu0 %v590
    %672 = vmatpush.bf16.msra.mxu0 %v588
    %673 = vmatpush.bf16.msra.mxu0 %v586
    %674 = vmatpush.bf16.msra.mxu0 %v584
    %675 = vmatpush.bf16.msra.mxu0 %v582
    %676 = vmatpush.bf16.msra.mxu0 %v580
    %677 = vmatmul.bf16.gmra.mxu0 %v428
    %v678 = vpop.f32.mrf.mxu0
    %v679 = vadd.f32 %v665, %v678
    %v680 = vpop.f32.mrf.mxu0
    %v681 = vadd.f32 %v667, %v680
    %682 = vdwg.mxu0
    %v683 = vpack.c.bf16 %v679, %v651
    %v684 = vpack.c.bf16 %v681, %v653
    %685 = vst [vmem:[%s7] sm:$0xff] %v683
    %686 = vst [vmem:[%s7 + $0x8] sm:$0xff] %v684
    %s687 = smul.u32 0, 16
    %v688 = vlaneseq
    %v689 = vshrl.u32 %v688, 7
    %v690 = vadd.s32 %v689, 8
    %v691 = vstv %s687
    %v692 = vadd.s32 %v691, %v689
    %v693 = vadd.s32 %v691, %v690
    %vm694 = vcmp.lt.s32.totalorder %v692, 8
    %vm695 = vcmp.lt.s32.totalorder %v693, 8
    %v696 = vsel %vm694, 1, 0
    %v697 = vsel %vm695, 1, 0
    %vm698 = vcmp.eq.s32.totalorder %v696, 1
    %vm699 = vcmp.eq.s32.totalorder %v697, 1
    %v700 = vsel %vm698, %v651, 0.0
    %v701 = vsel %vm698, %v679, 0.0
    %v702 = vsel %vm699, %v653, 0.0
    %v703 = vsel %vm699, %v681, 0.0
    %v704 = vadd.f32 %v700, %v702
    %v705 = vrot.slane %v704, 4
    %v706 = vadd.f32 %v704, %v705
    %v707 = vrot.slane %v706, 2
    %v708 = vadd.f32 %v706, %v707
    %v709 = vrot.slane %v708, 1
    %v710 = vadd.f32 %v708, %v709
    %v711 = vadd.f32 %v701, %v703
    %v712 = vrot.slane %v711, 4
    %v713 = vadd.f32 %v711, %v712
    %v714 = vrot.slane %v713, 2
    %v715 = vadd.f32 %v713, %v714
    %v716 = vrot.slane %v715, 1
    %v717 = vadd.f32 %v715, %v716
    %v718 = vmul.f32 %v700, %v700
    %v719 = vmul.f32 %v701, %v701
    %v720 = vmul.f32 %v702, %v702
    %v721 = vmul.f32 %v703, %v703
    %v722 = vadd.f32 %v718, %v720
    %v723 = vrot.slane %v722, 4
    %v724 = vadd.f32 %v722, %v723
    %v725 = vrot.slane %v724, 2
    %v726 = vadd.f32 %v724, %v725
    %v727 = vrot.slane %v726, 1
    %v728 = vadd.f32 %v726, %v727
    %v729 = vadd.f32 %v719, %v721
    %v730 = vrot.slane %v729, 4
    %v731 = vadd.f32 %v729, %v730
    %v732 = vrot.slane %v731, 2
    %v733 = vadd.f32 %v731, %v732
    %v734 = vrot.slane %v733, 1
    %v735 = vadd.f32 %v733, %v734
    %vm736 = vcmp.eq.s32.totalorder %v689, 0
    %v737 = vsel %vm736, %v710, 0.0
    %v738 = vsel %vm736, %v717, 0.0
    %vm739 = vcmp.eq.s32.totalorder %v689, 1
    %v740 = vsel %vm739, %v728, 0.0
    %v741 = vsel %vm739, %v735, 0.0
    %v742 = vadd.f32 %v737, %v740
    %v743 = vadd.f32 %v738, %v741
    %744 = vst [vmem:[%s8] sm:$0xff] %v742
    %745 = vst [vmem:[%s8 + $0x8] sm:$0xff] %v743
    // Predicated region
    $region42: #{generator_forward.2} parent=1 // pred_check
      _
    $region43: #{generator_forward.2} parent=1 // pred_check_branch
      %747 = sbr.rel (0) target = $region45
    $region44: #{generator_forward.2} parent=1 // pred_region
      _
    $region45: #{generator_forward.2} parent=1 // pred_fallthru
      _
    // Predicated region
    $region46: #{generator_forward.2} parent=1 // pred_check
      _
    $region47: #{generator_forward.2} parent=1 // pred_check_branch
      %749 = sbr.rel (0) target = $region49
    $region48: #{generator_forward.2} parent=1 // pred_region
      _
    $region49: #{generator_forward.2} parent=1 // pred_fallthru
      _
    // Predicated region
    $region50: #{generator_forward.2} parent=1 // pred_check
      _
    $region51: #{generator_forward.2} parent=1 // pred_check_branch
      %751 = sbr.rel (0) target = $region53
    $region52: #{generator_forward.2} parent=1 // pred_region
      _
    $region53: #{generator_forward.2} parent=1 // pred_fallthru
      _
    // Predicated region
    $region54: #{generator_forward.2} parent=1 // pred_check
      _
    $region55: #{generator_forward.2} parent=1 // pred_check_branch
      %753 = sbr.rel (0) target = $region57
    $region56: #{generator_forward.2} parent=1 // pred_region
      _
    $region57: #{generator_forward.2} parent=1 // pred_fallthru
      _
    %754 = vsyncpa [#allocation3], 1
    %755 = vsyncpa [#allocation5], 1

// kernel: generator_forward.3
$region0: #{generator_forward.3}
  #allocation0 [shape = 'u32[]', space=smem, size = 0x4, offset = 0x4, fixed_abs, tag = 'smem constant byte address 0x4 - core index']
  #allocation1 [shape = 'u32[72,128]{1,0:T(1,128)}', space=vmem, size = 0x9000, scoped, tag = 'internal scratch']
  %s0 = inlined_call_operand.vmem [shape: bf16[16,256], index: 0, kind: input, shape index: {}]
  %s1 = inlined_call_operand.vmem [shape: f32[1,256], index: 1, kind: input, shape index: {}]
  %s2 = inlined_call_operand.vmem [shape: f32[1,256], index: 2, kind: input, shape index: {}]
  %s3 = inlined_call_operand.vmem [shape: bf16[256,32], index: 3, kind: input, shape index: {}]
  %s4 = inlined_call_operand.vmem [shape: f32[1,32], index: 4, kind: input, shape index: {}]
  %s5 = inlined_call_operand.vmem [shape: f32[16,32], index: 5, kind: output, shape index: {}]
  %s6 = sld [smem:[#allocation0]]
  $region30: #{generator_forward.3} parent=0
    _
  %s8 = ssub.s32 1, %s6
  %s9 = scalar_select 0, %s8, %s6
  // Predicated region
  $region2: #{generator_forward.3} parent=0 // pred_check
    _
  $region3: #{generator_forward.3} parent=0 // pred_check_branch
    %11 = sbr.rel (0) target = $region5
  $region4: #{generator_forward.3} parent=0 // pred_region
    _
  $region5: #{generator_forward.3} parent=0 // pred_fallthru
    _
  // Predicated region
  $region6: #{generator_forward.3} parent=0 // pred_check
    _
  $region7: #{generator_forward.3} parent=0 // pred_check_branch
    %13 = sbr.rel (0) target = $region9
  $region8: #{generator_forward.3} parent=0 // pred_region
    _
  $region9: #{generator_forward.3} parent=0 // pred_fallthru
    _
  // Predicated region
  $region10: #{generator_forward.3} parent=0 // pred_check
    _
  $region11: #{generator_forward.3} parent=0 // pred_check_branch
    %15 = sbr.rel (0) target = $region13
  $region12: #{generator_forward.3} parent=0 // pred_region
    _
  $region13: #{generator_forward.3} parent=0 // pred_fallthru
    _
  // Predicated region
  $region14: #{generator_forward.3} parent=0 // pred_check
    _
  $region15: #{generator_forward.3} parent=0 // pred_check_branch
    %17 = sbr.rel (0) target = $region17
  $region16: #{generator_forward.3} parent=0 // pred_region
    _
  $region17: #{generator_forward.3} parent=0 // pred_fallthru
    _
  // Predicated region
  $region18: #{generator_forward.3} parent=0 // pred_check
    _
  $region19: #{generator_forward.3} parent=0 // pred_check_branch
    %19 = sbr.rel (0) target = $region21
  $region20: #{generator_forward.3} parent=0 // pred_region
    _
  $region21: #{generator_forward.3} parent=0 // pred_fallthru
    _
  %v20 = vld [vmem:[%s0] sm:$0xff]
  %v21 = vld [vmem:[%s0 + $0x8] sm:$0xff]
  %v22 = vunpack.c.l.bf16 %v20
  %v23 = vunpack.c.h.bf16 %v20
  %v24 = vunpack.c.l.bf16 %v21
  %v25 = vunpack.c.h.bf16 %v21
  %v26 = vld [vmem:[%s1] sm:$0x3]
  %v28 = vperm.slane %v26, 0
  %v29 = vperm.slane %v26, 1
  %v32 = vmul.f32 %v22, %v28
  %v33 = vmul.f32 %v23, %v29
  %v34 = vmul.f32 %v24, %v28
  %v35 = vmul.f32 %v25, %v29
  %v36 = vld [vmem:[%s2] sm:$0x3]
  %v38 = vperm.slane %v36, 0
  %v39 = vperm.slane %v36, 1
  %v42 = vadd.f32 %v32, %v38
  %v43 = vadd.f32 %v33, %v39
  %v44 = vadd.f32 %v34, %v38
  %v45 = vadd.f32 %v35, %v39
  %vm46 = vcmp.gt.f32.partialorder %v42, 0.0
  %vm47 = vcmp.gt.f32.partialorder %v43, 0.0
  %vm48 = vcmp.gt.f32.partialorder %v44, 0.0
  %vm49 = vcmp.gt.f32.partialorder %v45, 0.0
  %v50 = vmul.f32 %v42, 0.2
  %v51 = vmul.f32 %v43, 0.2
  %v52 = vmul.f32 %v44, 0.2
  %v53 = vmul.f32 %v45, 0.2
  %v54 = vsel %vm46, %v42, %v50
  %v55 = vsel %vm47, %v43, %v51
  %v56 = vsel %vm48, %v44, %v52
  %v57 = vsel %vm49, %v45, %v53
  %v58 = vpack.c.bf16 %v56, %v54
  %v59 = vpack.c.bf16 %v57, %v55
  %v60 = vld [vmem:[%s3] sm:$0xf]
  %v61 = vld [vmem:[%s3 + $0x4] sm:$0xf]
  %v62 = vld [vmem:[%s3 + $0x8] sm:$0xf]
  %v63 = vld [vmem:[%s3 + $0xc] sm:$0xf]
  %v64 = vld [vmem:[%s3 + $0x10] sm:$0xf]
  %v65 = vld [vmem:[%s3 + $0x14] sm:$0xf]
  %v66 = vld [vmem:[%s3 + $0x18] sm:$0xf]
  %v67 = vld [vmem:[%s3 + $0x1c] sm:$0xf]
  %v68 = vld [vmem:[%s3 + $0x20] sm:$0xf]
  %v69 = vld [vmem:[%s3 + $0x24] sm:$0xf]
  %v70 = vld [vmem:[%s3 + $0x28] sm:$0xf]
  %v71 = vld [vmem:[%s3 + $0x2c] sm:$0xf]
  %v72 = vld [vmem:[%s3 + $0x30] sm:$0xf]
  %v73 = vld [vmem:[%s3 + $0x34] sm:$0xf]
  %v74 = vld [vmem:[%s3 + $0x38] sm:$0xf]
  %v75 = vld [vmem:[%s3 + $0x3c] sm:$0xf]
  %v76 = vld [vmem:[%s3 + $0x40] sm:$0xf]
  %v77 = vld [vmem:[%s3 + $0x44] sm:$0xf]
  %v78 = vld [vmem:[%s3 + $0x48] sm:$0xf]
  %v79 = vld [vmem:[%s3 + $0x4c] sm:$0xf]
  %v80 = vld [vmem:[%s3 + $0x50] sm:$0xf]
  %v81 = vld [vmem:[%s3 + $0x54] sm:$0xf]
  %v82 = vld [vmem:[%s3 + $0x58] sm:$0xf]
  %v83 = vld [vmem:[%s3 + $0x5c] sm:$0xf]
  %v84 = vld [vmem:[%s3 + $0x60] sm:$0xf]
  %v85 = vld [vmem:[%s3 + $0x64] sm:$0xf]
  %v86 = vld [vmem:[%s3 + $0x68] sm:$0xf]
  %v87 = vld [vmem:[%s3 + $0x6c] sm:$0xf]
  %v88 = vld [vmem:[%s3 + $0x70] sm:$0xf]
  %v89 = vld [vmem:[%s3 + $0x74] sm:$0xf]
  %v90 = vld [vmem:[%s3 + $0x78] sm:$0xf]
  %v91 = vld [vmem:[%s3 + $0x7c] sm:$0xf]
  %v92 = vld [vmem:[%s4] sm:$0x1]
  %v94 = vperm.slane %v92, 0
  %v128 = vunpack.c.l.b16 %v60
  %v129 = vunpack.c.l.b16 %v61
  %v130 = vunpack.c.l.b16 %v62
  %v131 = vunpack.c.l.b16 %v63
  %v132 = vunpack.c.l.b16 %v64
  %v133 = vunpack.c.l.b16 %v65
  %v134 = vunpack.c.l.b16 %v66
  %v135 = vunpack.c.l.b16 %v67
  %v136 = vunpack.c.l.b16 %v68
  %v137 = vunpack.c.l.b16 %v69
  %v138 = vunpack.c.l.b16 %v70
  %v139 = vunpack.c.l.b16 %v71
  %v140 = vunpack.c.l.b16 %v72
  %v141 = vunpack.c.l.b16 %v73
  %v142 = vunpack.c.l.b16 %v74
  %v143 = vunpack.c.l.b16 %v75
  %v144 = vunpack.c.l.b16 %v76
  %v145 = vunpack.c.l.b16 %v77
  %v146 = vunpack.c.l.b16 %v78
  %v147 = vunpack.c.l.b16 %v79
  %v148 = vunpack.c.l.b16 %v80
  %v149 = vunpack.c.l.b16 %v81
  %v150 = vunpack.c.l.b16 %v82
  %v151 = vunpack.c.l.b16 %v83
  %v152 = vunpack.c.l.b16 %v84
  %v153 = vunpack.c.l.b16 %v85
  %v154 = vunpack.c.l.b16 %v86
  %v155 = vunpack.c.l.b16 %v87
  %v156 = vunpack.c.l.b16 %v88
  %v157 = vunpack.c.l.b16 %v89
  %v158 = vunpack.c.l.b16 %v90
  %v159 = vunpack.c.l.b16 %v91
  %v160 = vpack.c.b16 %v129, %v128
  %v161 = vpack.c.b16 %v131, %v130
  %v162 = vpack.c.b16 %v133, %v132
  %v163 = vpack.c.b16 %v135, %v134
  %v164 = vpack.c.b16 %v137, %v136
  %v165 = vpack.c.b16 %v139, %v138
  %v166 = vpack.c.b16 %v141, %v140
  %v167 = vpack.c.b16 %v143, %v142
  %v168 = vpack.c.b16 %v145, %v144
  %v169 = vpack.c.b16 %v147, %v146
  %v170 = vpack.c.b16 %v149, %v148
  %v171 = vpack.c.b16 %v151, %v150
  %v172 = vpack.c.b16 %v153, %v152
  %v173 = vpack.c.b16 %v155, %v154
  %v174 = vpack.c.b16 %v157, %v156
  %v175 = vpack.c.b16 %v159, %v158
  %192 = vmatpush.bf16.msra.mxu0 %v167
  %193 = vmatpush.bf16.msra.mxu0 %v166
  %194 = vmatpush.bf16.msra.mxu0 %v165
  %195 = vmatpush.bf16.msra.mxu0 %v164
  %196 = vmatpush.bf16.msra.mxu0 %v163
  %197 = vmatpush.bf16.msra.mxu0 %v162
  %198 = vmatpush.bf16.msra.mxu0 %v161
  %199 = vmatpush.bf16.msra.mxu0 %v160
  %200 = vmatmul.bf16.gmra.mxu0 %v58
  %v201 = vpop.f32.mrf.mxu0
  %v202 = vadd.f32 %v94, %v201
  %v203 = vpop.f32.mrf.mxu0
  %v204 = vadd.f32 %v94, %v203
  %205 = vdwg.mxu0
  %206 = vmatpush.bf16.msra.mxu0 %v175
  %207 = vmatpush.bf16.msra.mxu0 %v174
  %208 = vmatpush.bf16.msra.mxu0 %v173
  %209 = vmatpush.bf16.msra.mxu0 %v172
  %210 = vmatpush.bf16.msra.mxu0 %v171
  %211 = vmatpush.bf16.msra.mxu0 %v170
  %212 = vmatpush.bf16.msra.mxu0 %v169
  %213 = vmatpush.bf16.msra.mxu0 %v168
  %214 = vmatmul.bf16.gmra.mxu0 %v59
  %v215 = vpop.f32.mrf.mxu0
  %v216 = vadd.f32 %v202, %v215
  %v217 = vpop.f32.mrf.mxu0
  %v218 = vadd.f32 %v204, %v217
  %219 = vdwg.mxu0
  %vm220 = vcmask 261120
  %221 = vst.msk [vmem:[%s5] sm:$0xff] %vm220, %v216
  %222 = vst.msk [vmem:[%s5 + $0x8] sm:$0xff] %vm220, %v218
  // Predicated region
  $region22: #{generator_forward.3} parent=0 // pred_check
    _
  $region23: #{generator_forward.3} parent=0 // pred_check_branch
    %224 = sbr.rel (0) target = $region25
  $region24: #{generator_forward.3} parent=0 // pred_region
    _
  $region25: #{generator_forward.3} parent=0 // pred_fallthru
    _
  // Predicated region
  $region26: #{generator_forward.3} parent=0 // pred_check
    _
  $region27: #{generator_forward.3} parent=0 // pred_check_branch
    %226 = sbr.rel (0) target = $region29
  $region28: #{generator_forward.3} parent=0 // pred_region
    _
  $region29: #{generator_forward.3} parent=0 // pred_fallthru
    _

</llo_original>
